<compile_context>
chip_gen: v5e
topology: v5e:2x2
jax: 0.10.0
libtpu: 0.0.40
codegen_flags: <defaults>
</compile_context>

<pallas_src>
import functools

import jax
import jax.numpy as jnp
from jax.experimental import pallas as pl
from jax.experimental.pallas import tpu as pltpu


_LANE = 128
_BLOCK_BUDGET = 1 << 20            # ~1 MiB f32 working set per block (two-pass path)
_DEFAULT_MAX_FUSED_BYTES = 3 << 19  # <= 1.5 MiB f32 per batch row -> single-pass path


def _pick_length_tile(L: int, cap: int) -> int:
    """Largest multiple of 128 that divides L and is <= cap; else full L."""
    cap = max(cap, _LANE)
    best = 0
    t = _LANE
    while t <= min(L, cap):
        if L % t == 0:
            best = t
        t += _LANE
    return best if best else L


def _pick_batch_tile(B: int, per_row_bytes: int, budget: int) -> int:
    """Largest divisor of B whose block stays under `budget` bytes (>= 1)."""
    best = 1
    for t in range(1, B + 1):
        if B % t == 0 and t * per_row_bytes <= budget:
            best = t
    return best


# ----------------------------------------------------------------------------
# Single-pass fused kernel: pool + fc1 + ReLU + fc2 + sigmoid + rescale
# ----------------------------------------------------------------------------
def _se_fused_kernel(x_ref, w1_ref, w2_ref, o_ref, *, inv_len):
    x = x_ref[...].astype(jnp.float32)                                   # (tb, C, L)
    pooled = jnp.sum(x, axis=-1) * inv_len                               # (tb, C)
    h = jnp.maximum(
        jnp.dot(pooled, w1_ref[...], preferred_element_type=jnp.float32),
        0.0)                                                             # (tb, C/r)
    s = jax.nn.sigmoid(
        jnp.dot(h, w2_ref[...], preferred_element_type=jnp.float32))     # (tb, C)
    o_ref[...] = (x * s[:, :, None]).astype(o_ref.dtype)


# ----------------------------------------------------------------------------
# Two-pass path, pass 1: fused global-average-pool + fc1 + ReLU + fc2 + sigmoid
# ----------------------------------------------------------------------------
def _se_gate_kernel(x_ref, w1_ref, w2_ref, s_ref, acc_ref, *, inv_len):
    l = pl.program_id(1)

    @pl.when(l == 0)
    def _():
        acc_ref[...] = jnp.zeros_like(acc_ref)

    # Partial sum over this length tile: (tb, C, tl) -> (tb, C).
    acc_ref[...] += jnp.sum(x_ref[...].astype(jnp.float32), axis=-1)

    @pl.when(l == pl.num_programs(1) - 1)
    def _():
        pooled = acc_ref[...] * inv_len                                   # (tb, C)
        h = jnp.maximum(
            jnp.dot(pooled, w1_ref[...], preferred_element_type=jnp.float32),
            0.0)                                                          # (tb, C/r)
        s = jax.nn.sigmoid(
            jnp.dot(h, w2_ref[...], preferred_element_type=jnp.float32))  # (tb, C)
        s_ref[...] = s[:, :, None].astype(s_ref.dtype)                    # (tb, C, 1)


# ----------------------------------------------------------------------------
# Two-pass path, pass 2: channel-wise rescale  x[b, c, l] * s[b, c]
# ----------------------------------------------------------------------------
def _se_rescale_kernel(x_ref, s_ref, o_ref):
    x = x_ref[...].astype(jnp.float32)        # (tb, C, tl)
    s = s_ref[...].astype(jnp.float32)        # (tb, C, 1) -> cheap lane broadcast
    o_ref[...] = (x * s).astype(o_ref.dtype)


# ----------------------------------------------------------------------------
# Public wrapper
# ----------------------------------------------------------------------------
def se_layer_1d(x, w1, w2, *, max_fused_bytes=_DEFAULT_MAX_FUSED_BYTES):
    """SELayer1D forward.

    x : (B, C, L)
    w1: (C, C//reduction)   == PyTorch fc[0].weight.T   (no bias)
    w2: (C//reduction, C)   == PyTorch fc[2].weight.T   (no bias)
    """
    B, C, L = x.shape
    Cr = w1.shape[1]
    assert w1.shape == (C, Cr) and w2.shape == (Cr, C), (w1.shape, w2.shape)

    w1f = w1.astype(jnp.float32)
    w2f = w2.astype(jnp.float32)
    inv_len = 1.0 / L
    row_f32_bytes = C * L * 4

    # ---------------- single-pass fused path (x read from HBM once) ----------
    if row_f32_bytes <= max_fused_bytes:
        tb = _pick_batch_tile(B, row_f32_bytes, max_fused_bytes)
        return pl.pallas_call(
            functools.partial(_se_fused_kernel, inv_len=inv_len),
            out_shape=jax.ShapeDtypeStruct((B, C, L), x.dtype),
            grid=(B // tb,),
            in_specs=[
                pl.BlockSpec((tb, C, L), lambda b: (b, 0, 0)),
                pl.BlockSpec((C, Cr), lambda b: (0, 0)),
                pl.BlockSpec((Cr, C), lambda b: (0, 0)),
            ],
            out_specs=pl.BlockSpec((tb, C, L), lambda b: (b, 0, 0)),
            compiler_params=pltpu.CompilerParams(
                dimension_semantics=("parallel",)),
        )(x, w1f, w2f)

    # ---------------- two-pass path for large C * L ---------------------------
    tl = _pick_length_tile(L, cap=max(_BLOCK_BUDGET // (C * 4), _LANE))
    nl = L // tl
    tb = _pick_batch_tile(B, C * tl * 4, _BLOCK_BUDGET)
    nb = B // tb

    # Pass 1: fused pool + MLP gate -> per-(b, c) scale, shape (B, C, 1) f32.
    scale = pl.pallas_call(
        functools.partial(_se_gate_kernel, inv_len=inv_len),
        out_shape=jax.ShapeDtypeStruct((B, C, 1), jnp.float32),
        grid=(nb, nl),
        in_specs=[
            pl.BlockSpec((tb, C, tl), lambda b, l: (b, 0, l)),
            pl.BlockSpec((C, Cr), lambda b, l: (0, 0)),
            pl.BlockSpec((Cr, C), lambda b, l: (0, 0)),
        ],
        out_specs=pl.BlockSpec((tb, C, 1), lambda b, l: (b, 0, 0)),
        scratch_shapes=[pltpu.VMEM((tb, C), jnp.float32)],
        compiler_params=pltpu.CompilerParams(
            dimension_semantics=("parallel", "arbitrary")),
    )(x, w1f, w2f)

    # Pass 2: tiled, fully parallel channel rescale.
    out = pl.pallas_call(
        _se_rescale_kernel,
        out_shape=jax.ShapeDtypeStruct((B, C, L), x.dtype),
        grid=(nb, nl),
        in_specs=[
            pl.BlockSpec((tb, C, tl), lambda b, l: (b, 0, l)),
            pl.BlockSpec((tb, C, 1), lambda b, l: (b, 0, 0)),
        ],
        out_specs=pl.BlockSpec((tb, C, tl), lambda b, l: (b, 0, l)),
        compiler_params=pltpu.CompilerParams(
            dimension_semantics=("parallel", "parallel")),
    )(x, scale)
    return out


# ----------------------------------------------------------------------------
# Pure-JAX reference (matches the PyTorch module's forward)
# ----------------------------------------------------------------------------
def _se_ref(x, w1, w2):
    xf = x.astype(jnp.float32)
    pooled = jnp.mean(xf, axis=-1)                                       # (B, C)
    h = jnp.maximum(
        jnp.dot(pooled, w1, precision=jax.lax.Precision.HIGHEST), 0.0)
    s = jax.nn.sigmoid(jnp.dot(h, w2, precision=jax.lax.Precision.HIGHEST))
    return (xf * s[:, :, None]).astype(x.dtype)


if __name__ == "__main__":
    key = jax.random.PRNGKey(0)
    fwd = jax.jit(se_layer_1d)

    # ---- test 1: small shapes (exercises the single-pass fused path) --------
    B, C, L, reduction = 2, 32, 64, 4
    Cr = C // reduction
    kx, k1, k2, key = jax.random.split(key, 4)
    x = jax.random.normal(kx, (B, C, L), jnp.float32)
    # PyTorch nn.Linear stores weight as (out, in); keep the transposed
    # (in, out) layout so the kernels compute x @ W^T directly.
    w1 = jax.random.normal(k1, (C, Cr), jnp.float32) / jnp.sqrt(C)
    w2 = jax.random.normal(k2, (Cr, C), jnp.float32) / jnp.sqrt(Cr)

    out = fwd(x, w1, w2)
    jax.block_until_ready(out)
    ref = _se_ref(x, w1, w2)
    assert out.shape == (B, C, L) and out.dtype == x.dtype
    err1 = float(jnp.max(jnp.abs(out - ref)))
    assert jnp.allclose(out, ref, atol=1e-2, rtol=1e-2), err1

    # ---- test 2: larger L (exercises the two-pass accumulator path) ---------
    B2, C2, L2 = 2, 64, 8192
    Cr2 = C2 // reduction
    kx, k1, k2, key = jax.random.split(key, 4)
    x2 = jax.random.normal(kx, (B2, C2, L2), jnp.float32)
    w1b = jax.random.normal(k1, (C2, Cr2), jnp.float32) / jnp.sqrt(C2)
    w2b = jax.random.normal(k2, (Cr2, C2), jnp.float32) / jnp.sqrt(Cr2)

    out2 = fwd(x2, w1b, w2b)
    jax.block_until_ready(out2)
    ref2 = _se_ref(x2, w1b, w2b)
    assert out2.shape == (B2, C2, L2) and out2.dtype == x2.dtype
    err2 = float(jnp.max(jnp.abs(out2 - ref2)))
    assert jnp.allclose(out2, ref2, atol=1e-2, rtol=1e-2), err2

    print("KERNEL_OK")
</pallas_src>

<mosaic_0001>
module attributes {stable_mosaic.version = 11 : i64} {
  func.func @_se_fused_kernel(%arg0: i32, %arg1: memref<2x32x64xf32, #tpu.memory_space<vmem>>, %arg2: memref<32x8xf32, #tpu.memory_space<vmem>>, %arg3: memref<8x32xf32, #tpu.memory_space<vmem>>, %arg4: memref<2x32x64xf32, #tpu.memory_space<vmem>>) attributes {dimension_semantics = [#tpu.dimension_semantics<parallel>], iteration_bounds = array<i64: 1>, scalar_prefetch = 0 : i64, scratch_operands = 0 : i64, tpu.core_type = #tpu.core_type<tc>, window_params = [{transform_indices = @transform_0, window_bounds = array<i64: 2, 32, 64>}, {pipeline_mode = #tpu.pipeline_mode<synchronous>, transform_indices = @transform_1, window_bounds = array<i64: 32, 8>}, {pipeline_mode = #tpu.pipeline_mode<synchronous>, transform_indices = @transform_2, window_bounds = array<i64: 8, 32>}, {transform_indices = @transform_3, window_bounds = array<i64: 2, 32, 64>}]} {
    %c0 = arith.constant 0 : index
    %c0_0 = arith.constant 0 : index
    %c0_1 = arith.constant 0 : index
    %0 = vector.load %arg1[%c0, %c0_0, %c0_1] : memref<2x32x64xf32, #tpu.memory_space<vmem>>, vector<2x32x64xf32>
    %cst = arith.constant dense<0.000000e+00> : vector<2x32xf32>
    %1 = vector.multi_reduction <add>, %0, %cst [2] : vector<2x32x64xf32> to vector<2x32xf32>
    %cst_2 = arith.constant 1.562500e-02 : f32
    %2 = vector.broadcast %cst_2 : f32 to vector<2x32xf32>
    %3 = arith.mulf %1, %2 : vector<2x32xf32>
    %c0_3 = arith.constant 0 : index
    %c0_4 = arith.constant 0 : index
    %4 = vector.load %arg2[%c0_3, %c0_4] : memref<32x8xf32, #tpu.memory_space<vmem>>, vector<32x8xf32>
    %cst_5 = arith.constant dense<0.000000e+00> : vector<2x8xf32>
    %5 = tpu.matmul %3, %4, %cst_5 {dimension_numbers = #tpu.dot_dimension_numbers<[1], [0], [0], [1], [0, 0, 1, 1], [], []>} : vector<2x32xf32>, vector<32x8xf32>, vector<2x8xf32> -> vector<2x8xf32>
    %cst_6 = arith.constant 0.000000e+00 : f32
    %6 = vector.broadcast %cst_6 : f32 to vector<2x8xf32>
    %7 = arith.maximumf %5, %6 : vector<2x8xf32>
    %c0_7 = arith.constant 0 : index
    %c0_8 = arith.constant 0 : index
    %8 = vector.load %arg3[%c0_7, %c0_8] : memref<8x32xf32, #tpu.memory_space<vmem>>, vector<8x32xf32>
    %cst_9 = arith.constant dense<0.000000e+00> : vector<2x32xf32>
    %9 = tpu.matmul %7, %8, %cst_9 {dimension_numbers = #tpu.dot_dimension_numbers<[1], [0], [0], [1], [0, 0, 1, 1], [], []>} : vector<2x8xf32>, vector<8x32xf32>, vector<2x32xf32> -> vector<2x32xf32>
    %10 = arith.negf %9 : vector<2x32xf32>
    %11 = math.exp %10 : vector<2x32xf32>
    %cst_10 = arith.constant 1.000000e+00 : f32
    %12 = vector.broadcast %cst_10 : f32 to vector<2x32xf32>
    %13 = arith.addf %12, %11 : vector<2x32xf32>
    %14 = arith.divf %12, %13 : vector<2x32xf32>
    %15 = vector.shape_cast %14 : vector<2x32xf32> to vector<2x32x1xf32>
    %16 = vector.broadcast %15 : vector<2x32x1xf32> to vector<2x32x64xf32>
    %17 = arith.mulf %0, %16 : vector<2x32x64xf32>
    %c0_11 = arith.constant 0 : index
    %c0_12 = arith.constant 0 : index
    %c0_13 = arith.constant 0 : index
    %18 = vector.load %arg4[%c0_11, %c0_12, %c0_13] : memref<2x32x64xf32, #tpu.memory_space<vmem>>, vector<2x32x64xf32>
    tpu.vector_store %arg4[%c0_11, %c0_12, %c0_13], %17 {strides = array<i32>} : memref<2x32x64xf32, #tpu.memory_space<vmem>>, vector<2x32x64xf32>,
    return
  }
  func.func @transform_0(%arg0: i32) -> (i32, i32, i32) {
    %c0_i32 = arith.constant 0 : i32
    %c0_i32_0 = arith.constant 0 : i32
    %c0_i32_1 = arith.constant 0 : i32
    return %arg0, %c0_i32, %c0_i32_0 : i32, i32, i32
  }
  func.func @transform_1(%arg0: i32) -> (i32, i32) {
    %c0_i32 = arith.constant 0 : i32
    %c0_i32_0 = arith.constant 0 : i32
    %c0_i32_1 = arith.constant 0 : i32
    return %c0_i32, %c0_i32_0 : i32, i32
  }
  func.func @transform_2(%arg0: i32) -> (i32, i32) {
    %c0_i32 = arith.constant 0 : i32
    %c0_i32_0 = arith.constant 0 : i32
    %c0_i32_1 = arith.constant 0 : i32
    return %c0_i32, %c0_i32_0 : i32, i32
  }
  func.func @transform_3(%arg0: i32) -> (i32, i32, i32) {
    %c0_i32 = arith.constant 0 : i32
    %c0_i32_0 = arith.constant 0 : i32
    %c0_i32_1 = arith.constant 0 : i32
    return %arg0, %c0_i32, %c0_i32_0 : i32, i32, i32
  }
}

</mosaic_0001>

<llo_original>
// kernel: se_layer_1d.1
$region0: #{se_layer_1d.1}
  #allocation0 [shape = 'u32[]', space=smem, size = 0x4, offset = 0x4, fixed_abs, tag = 'smem constant byte address 0x4 - core index']
  #allocation1 [shape = 'u32[72,128]{1,0:T(1,128)}', space=vmem, size = 0x9000, scoped, tag = 'internal scratch']
  %s0 = inlined_call_operand.hbm [shape: f32[2,32,64], index: 0, kind: input, shape index: {}]
  %s1 = inlined_call_operand.vmem [shape: f32[32,8], index: 1, kind: input, shape index: {}]
  %s2 = inlined_call_operand.vmem [shape: f32[8,32], index: 2, kind: input, shape index: {}]
  %s3 = inlined_call_operand.hbm [shape: f32[2,32,64], index: 3, kind: output, shape index: {}]
  %s4 = sld [smem:[#allocation0]]
  $region26: #{se_layer_1d.1} parent=0
    _
  %s6 = ssub.s32 1, %s4
  %s7 = scalar_select 0, %s6, %s4
  $region1: #{se_layer_1d.1} parent=0
    #allocation2 [shape = 'u8[32768]{0}', space=vmem, size = 0x8000, scoped, tag = 'input window, operand 0, single buffered']
    #allocation3 [shape = 's32[1]{0}', space=sflag, size = 0x4, scoped, tag = 'scoped memory for se_layer_1d.1']
    #allocation4 [shape = 's32[1]{0}', space=sflag, size = 0x4, scoped, tag = 'scoped memory for se_layer_1d.1']
    #allocation5 [shape = 'u8[32768]{0}', space=vmem, size = 0x8000, scoped, tag = 'output window, operand 0, single buffered']
    %8 = vsyncpa [#allocation3], 0
    %9 = vsyncpa [#allocation4], 0
    // Predicated region
    $region2: #{se_layer_1d.1} parent=1 // pred_check
      _
    $region3: #{se_layer_1d.1} parent=1 // pred_check_branch
      %11 = sbr.rel (0) target = $region5
    $region4: #{se_layer_1d.1} parent=1 // pred_region
      %13 = vsyncadd [#allocation3], 0
      %s14 = sshll.u32 %s0, 4
      %s15 = int_to_ptr.hbm [resolvable:$true] %s14
      %s16 = sshll.u32 [#allocation2], 4
      %s17 = int_to_ptr.vmem [resolvable:$true] %s16
      %22 = dma.hbm_to_vmem [thread:$0]  %s15, 1024, %s17, [#allocation3], 128, 128, 8
    $region5: #{se_layer_1d.1} parent=1 // pred_fallthru
      _
    // Predicated region
    $region6: #{se_layer_1d.1} parent=1 // pred_check
      _
    $region7: #{se_layer_1d.1} parent=1 // pred_check_branch
      %24 = sbr.rel (0) target = $region9
    $region8: #{se_layer_1d.1} parent=1 // pred_region
      _
    $region9: #{se_layer_1d.1} parent=1 // pred_fallthru
      _
    // Predicated region
    $region10: #{se_layer_1d.1} parent=1 // pred_check
      _
    $region11: #{se_layer_1d.1} parent=1 // pred_check_branch
      %26 = sbr.rel (0) target = $region13
    $region12: #{se_layer_1d.1} parent=1 // pred_region
      _
    $region13: #{se_layer_1d.1} parent=1 // pred_fallthru
      _
    // Predicated region
    $region14: #{se_layer_1d.1} parent=1 // pred_check
      _
    $region15: #{se_layer_1d.1} parent=1 // pred_check_branch
      %28 = sbr.rel (0) target = $region17
    $region16: #{se_layer_1d.1} parent=1 // pred_region
      %30 = dma.done [#allocation3], 1024
    $region17: #{se_layer_1d.1} parent=1 // pred_fallthru
      _
    %v31 = vld [vmem:[#allocation2] sm:$0xff]
    %v32 = vld [vmem:[#allocation2 + $0x8] sm:$0xff]
    %v33 = vld [vmem:[#allocation2 + $0x10] sm:$0xff]
    %v34 = vld [vmem:[#allocation2 + $0x18] sm:$0xff]
    %v35 = vld [vmem:[#allocation2 + $0x20] sm:$0xff]
    %v36 = vld [vmem:[#allocation2 + $0x28] sm:$0xff]
    %v37 = vld [vmem:[#allocation2 + $0x30] sm:$0xff]
    %v38 = vld [vmem:[#allocation2 + $0x38] sm:$0xff]
    %vm39 = vcmask 523264
    %v40 = vsel %vm39, %v31, 0.0
    %41 = vadd.xlane.f32.xlu0 %v40
    %v42 = vpop.xlane.xlu0 %41
    %v43 = vsel %vm39, %v32, 0.0
    %44 = vadd.xlane.f32.xlu0 %v43
    %v45 = vpop.xlane.xlu0 %44
    %v46 = vsel %vm39, %v33, 0.0
    %47 = vadd.xlane.f32.xlu0 %v46
    %v48 = vpop.xlane.xlu0 %47
    %v49 = vsel %vm39, %v34, 0.0
    %50 = vadd.xlane.f32.xlu0 %v49
    %v51 = vpop.xlane.xlu0 %50
    %v52 = vsel %vm39, %v35, 0.0
    %53 = vadd.xlane.f32.xlu0 %v52
    %v54 = vpop.xlane.xlu0 %53
    %v55 = vsel %vm39, %v36, 0.0
    %56 = vadd.xlane.f32.xlu0 %v55
    %v57 = vpop.xlane.xlu0 %56
    %v58 = vsel %vm39, %v37, 0.0
    %59 = vadd.xlane.f32.xlu0 %v58
    %v60 = vpop.xlane.xlu0 %59
    %v61 = vsel %vm39, %v38, 0.0
    %62 = vadd.xlane.f32.xlu0 %v61
    %v63 = vpop.xlane.xlu0 %62
    %v64 = vmul.f32 %v42, 0.015625
    %v65 = vmul.f32 %v45, 0.015625
    %v66 = vmul.f32 %v48, 0.015625
    %v67 = vmul.f32 %v51, 0.015625
    %v68 = vmul.f32 %v54, 0.015625
    %v69 = vmul.f32 %v57, 0.015625
    %v70 = vmul.f32 %v60, 0.015625
    %v71 = vmul.f32 %v63, 0.015625
    %v72 = vld [vmem:[%s1] sm:$0xff]
    %v73 = vld [vmem:[%s1 + $0x8] sm:$0xff]
    %v74 = vld [vmem:[%s1 + $0x10] sm:$0xff]
    %v75 = vld [vmem:[%s1 + $0x18] sm:$0xff]
    %v84 = vlaneseq
    %v85 = vand.u32 %v84, 127
    %v86 = vperm.slane %v64, %v85
    %v87 = vadd.s32 %v85, 4294967288
    %v88 = vperm.slane %v65, %v87
    %vm89 = vcmask 130112
    %v90 = vsel %vm89, %v88, %v86
    %v91 = vadd.s32 %v85, 4294967280
    %v92 = vperm.slane %v66, %v91
    %vm93 = vcmask 195712
    %v94 = vsel %vm93, %v92, %v90
    %v95 = vadd.s32 %v85, 4294967272
    %v96 = vperm.slane %v67, %v95
    %vm97 = vcmask 261312
    %v98 = vsel %vm97, %v96, %v94
    %v99 = vperm.slane %v68, %v85
    %v100 = vperm.slane %v69, %v87
    %v101 = vsel %vm89, %v100, %v99
    %v102 = vperm.slane %v70, %v91
    %v103 = vsel %vm93, %v102, %v101
    %v104 = vperm.slane %v71, %v95
    %v105 = vsel %vm97, %v104, %v103
    %vm106 = vcmask 1041409
    %v107 = vsel %vm106, %v105, %v98
    %vm108 = vcmask 261120
    %v109 = vsel %vm108, %v107, 0
    %111 = vmatpush.msra.mxu0 0.0
    %112 = vmatpush.msra.mxu0 0.0
    %113 = vmatpush.msra.mxu0 0.0
    %114 = vmatpush.msra.mxu0 0.0
    %115 = vmatpush.msra.mxu0 0.0
    %116 = vmatpush.msra.mxu0 0.0
    %117 = vmatpush.msra.mxu0 0.0
    %118 = vmatpush.msra.mxu0 0.0
    %119 = vmatpush.msra.mxu0 0.0
    %120 = vmatpush.msra.mxu0 0.0
    %121 = vmatpush.msra.mxu0 0.0
    %122 = vmatpush.msra.mxu0 0.0
    %123 = vmatpush.msra.mxu0 %v75
    %124 = vmatpush.msra.mxu0 %v74
    %125 = vmatpush.msra.mxu0 %v73
    %126 = vmatpush.msra.mxu0 %v72
    %127 = vmatmul.f32.gmra.mxu0 %v109
    %v128 = vpop.f32.mrf.mxu0
    %v129 = vadd.f32 0.0, %v128
    %130 = vdwg.mxu0
    %v131 = vmax.f32 %v129, 0.0
    %v132 = vld [vmem:[%s2] sm:$0xff]
    %vm133 = vcmask 64512
    %v135 = vsel %vm133, %v131, 0
    %137 = vmatpush.msra.mxu0 0.0
    %138 = vmatpush.msra.mxu0 0.0
    %139 = vmatpush.msra.mxu0 0.0
    %140 = vmatpush.msra.mxu0 0.0
    %141 = vmatpush.msra.mxu0 0.0
    %142 = vmatpush.msra.mxu0 0.0
    %143 = vmatpush.msra.mxu0 0.0
    %144 = vmatpush.msra.mxu0 0.0
    %145 = vmatpush.msra.mxu0 0.0
    %146 = vmatpush.msra.mxu0 0.0
    %147 = vmatpush.msra.mxu0 0.0
    %148 = vmatpush.msra.mxu0 0.0
    %149 = vmatpush.msra.mxu0 0.0
    %150 = vmatpush.msra.mxu0 0.0
    %151 = vmatpush.msra.mxu0 0.0
    %152 = vmatpush.msra.mxu0 %v132
    %153 = vmatmul.f32.gmra.mxu0 %v135
    %v154 = vpop.f32.mrf.mxu0
    %v155 = vadd.f32 0.0, %v154
    %156 = vdwg.mxu0
    %v157 = vxor.u32 %v155, 2147483648
    %v158 = vmul.f32 %v157, 1.442695
    %v159 = vpow.pop %v158
    %v160 = vadd.f32 %v159, 1.0
    %v161 = vrcp.pop %v160
    %v162 = vmul.f32 %v160, %v161
    %v163 = vsub.f32 1.0, %v162
    %v164 = vmul.f32 %v161, %v163
    %v165 = vadd.f32 %v161, %v164
    %vm166 = vweird.f32 %v160
    %vm167 = vweird.f32 %v161
    %vm168 = vmor %vm166, %vm167
    %v169 = vsel %vm168, %v161, %v165
    %v170 = vand.u32 2147483647, %v160
    %vm171 = vcmp.eq.f32.partialorder %v170, 8.507059e+37
    %v172 = vand.u32 %v160, 2147483648
    %v173 = vor.u32 1.1754944e-38, %v172
    %v174 = vsel %vm171, %v173, %v169
    %v175 = vmul.f32 1.0, %v174
    %v176 = vperm.slane %v175, 0
    %v177 = vlaneseq
    %v178 = vshrl.u32 %v177, 7
    %180 = vset.pattern.permute.xlu0 %v178
    %181 = vperm.xlu0 %180, %v176
    %v182 = vpop.permute.xlu0 %181
    %v183 = vlaneseq
    %v184 = vshrl.u32 %v183, 7
    %v185 = vadd.s32 %v184, 8
    %186 = vset.pattern.permute.xlu0 %v185
    %187 = vperm.xlu0 %186, %v176
    %v188 = vpop.permute.xlu0 %187
    %v189 = vlaneseq
    %v190 = vshrl.u32 %v189, 7
    %v191 = vadd.s32 %v190, 16
    %192 = vset.pattern.permute.xlu0 %v191
    %193 = vperm.xlu0 %192, %v176
    %v194 = vpop.permute.xlu0 %193
    %v195 = vlaneseq
    %v196 = vshrl.u32 %v195, 7
    %v197 = vadd.s32 %v196, 24
    %198 = vset.pattern.permute.xlu0 %v197
    %199 = vperm.xlu0 %198, %v176
    %v200 = vpop.permute.xlu0 %199
    %v201 = vperm.slane %v175, 1
    %v202 = vlaneseq
    %v203 = vshrl.u32 %v202, 7
    %205 = vset.pattern.permute.xlu0 %v203
    %206 = vperm.xlu0 %205, %v201
    %v207 = vpop.permute.xlu0 %206
    %v208 = vlaneseq
    %v209 = vshrl.u32 %v208, 7
    %v210 = vadd.s32 %v209, 8
    %211 = vset.pattern.permute.xlu0 %v210
    %212 = vperm.xlu0 %211, %v201
    %v213 = vpop.permute.xlu0 %212
    %v214 = vlaneseq
    %v215 = vshrl.u32 %v214, 7
    %v216 = vadd.s32 %v215, 16
    %217 = vset.pattern.permute.xlu0 %v216
    %218 = vperm.xlu0 %217, %v201
    %v219 = vpop.permute.xlu0 %218
    %v220 = vlaneseq
    %v221 = vshrl.u32 %v220, 7
    %v222 = vadd.s32 %v221, 24
    %223 = vset.pattern.permute.xlu0 %v222
    %224 = vperm.xlu0 %223, %v201
    %v225 = vpop.permute.xlu0 %224
    %v226 = vmul.f32 %v31, %v182
    %v227 = vmul.f32 %v32, %v188
    %v228 = vmul.f32 %v33, %v194
    %v229 = vmul.f32 %v34, %v200
    %v230 = vmul.f32 %v35, %v207
    %v231 = vmul.f32 %v36, %v213
    %v232 = vmul.f32 %v37, %v219
    %v233 = vmul.f32 %v38, %v225
    %234 = vst.msk [vmem:[#allocation5] sm:$0xff] %vm39, %v226
    %235 = vst.msk [vmem:[#allocation5 + $0x8] sm:$0xff] %vm39, %v227
    %236 = vst.msk [vmem:[#allocation5 + $0x10] sm:$0xff] %vm39, %v228
    %237 = vst.msk [vmem:[#allocation5 + $0x18] sm:$0xff] %vm39, %v229
    %238 = vst.msk [vmem:[#allocation5 + $0x20] sm:$0xff] %vm39, %v230
    %239 = vst.msk [vmem:[#allocation5 + $0x28] sm:$0xff] %vm39, %v231
    %240 = vst.msk [vmem:[#allocation5 + $0x30] sm:$0xff] %vm39, %v232
    %241 = vst.msk [vmem:[#allocation5 + $0x38] sm:$0xff] %vm39, %v233
    // Predicated region
    $region18: #{se_layer_1d.1} parent=1 // pred_check
      _
    $region19: #{se_layer_1d.1} parent=1 // pred_check_branch
      %243 = sbr.rel (0) target = $region21
    $region20: #{se_layer_1d.1} parent=1 // pred_region
      %245 = vsyncadd [#allocation4], 0
      %s246 = sshll.u32 [#allocation5], 4
      %s247 = int_to_ptr.vmem [resolvable:$true] %s246
      %s248 = sshll.u32 %s3, 4
      %s249 = int_to_ptr.hbm [resolvable:$true] %s248
      %254 = dma.vmem_to_hbm [thread:$0]  %s247, 1024, %s249, [#allocation4], 128, 128, 8
    $region21: #{se_layer_1d.1} parent=1 // pred_fallthru
      _
    // Predicated region
    $region22: #{se_layer_1d.1} parent=1 // pred_check
      _
    $region23: #{se_layer_1d.1} parent=1 // pred_check_branch
      %256 = sbr.rel (0) target = $region25
    $region24: #{se_layer_1d.1} parent=1 // pred_region
      %258 = dma.done [#allocation4], 1024
    $region25: #{se_layer_1d.1} parent=1 // pred_fallthru
      _
    %259 = vsyncpa [#allocation3], 1
    %260 = vsyncpa [#allocation4], 1

</llo_original>
